<compile_context>
chip_gen: v6e
topology: v6e:2x2x1
jax: 0.10.0
libtpu: 0.0.40
codegen_flags: <defaults>
</compile_context>

<pallas_src>
import math

import jax
import jax.numpy as jnp
import numpy as np
from jax.experimental import pallas as pl
from jax.experimental.pallas import tpu as pltpu  # noqa: F401  (kept for TPU-specific tuning hooks)

# ---- model hyper-parameters (small, consistent with the module) -------------
B = 2          # batch
S = 8          # seq_len
D = 32         # d_model
H = 4          # n_heads
DK = D // H    # d_k per head
FF = 64        # d_ff
BS = B * S     # flattened rows
EPS = 1e-5     # nn.LayerNorm default eps
INV_SCALE = 1.0 / math.sqrt(DK)
NEG_BIG = -1e30        # masked-score fill; exp() underflows to exactly 0 in f32

# shift amounts for the static masks (all sizes are powers of two)
S_SH = S.bit_length() - 1
BS_SH = BS.bit_length() - 1
DK_SH = DK.bit_length() - 1
assert S == 1 << S_SH and BS == 1 << BS_SH and DK == 1 << DK_SH


def _layernorm(x, gamma, beta):
    # x: (BS, D); gamma/beta: (1, D). Biased variance, matching torch.nn.LayerNorm.
    mu = jnp.mean(x, axis=-1, keepdims=True)
    xc = x - mu
    var = jnp.mean(xc * xc, axis=-1, keepdims=True)
    inv = jax.lax.rsqrt(var + EPS)
    return xc * inv * gamma + beta


def transformer_block_kernel(x_ref,       # (BS, D)
                             wbig_ref,    # (D, 3D + D + FF) = [wqkv | wo | w1]
                             w2_ref,      # (FF, D)
                             smalls_ref,  # (8, 3D) packed biases + LN params
                             o_ref):      # (BS, D)
    x = x_ref[...]                                     # (BS, D)

    # packed weight slab: [ wqkv (D,3D) | wo (D,D) | w1 (D,FF) ] along lanes
    wqkv = wbig_ref[:, 0:3 * D]
    wo = wbig_ref[:, 3 * D:4 * D]
    w1 = wbig_ref[:, 4 * D:4 * D + FF]

    smalls = smalls_ref[...]                           # (8, 3D)
    bqkv = smalls[0:1, :]                              # (1, 3D)  [bq | bk | bv]
    bo = smalls[1:2, 0:D]
    b1 = smalls[2:3, 0:FF]
    b2 = smalls[3:4, 0:D]
    g1 = smalls[4:5, 0:D]
    be1 = smalls[5:6, 0:D]
    g2 = smalls[6:7, 0:D]
    be2 = smalls[7:8, 0:D]

    # --- fused Q/K/V projection (1/sqrt(dk) already folded into wq/bq) -------
    qkv = jnp.dot(x, wqkv, preferred_element_type=jnp.float32) + bqkv
    q = qkv[:, 0:D]
    k = qkv[:, D:2 * D]
    v = qkv[:, 2 * D:3 * D]

    # head block-diagonal 0/1 selector: (H*BS, D), 1 iff (row // BS) == (col // DK)
    hr = jax.lax.broadcasted_iota(jnp.int32, (H * BS, D), 0)
    hc = jax.lax.broadcasted_iota(jnp.int32, (H * BS, D), 1)
    bd_sel = jnp.where((hr >> BS_SH) == (hc >> DK_SH), 1.0, 0.0)   # f32 0/1

    # block-diagonal K / V slabs: row block h holds only head h's DK columns
    k_bd = jnp.concatenate([k] * H, axis=0) * bd_sel               # (H*BS, D)
    v_bd = jnp.concatenate([v] * H, axis=0) * bd_sel               # (H*BS, D)

    # --- all-head attention scores in one (BS, H*BS) slab ---------------------
    # column block h == Q_h @ K_h^T  (contraction over D hits only head h's cols)
    scores = jax.lax.dot_general(q, k_bd, (((1,), (1,)), ((), ())),
                                 preferred_element_type=jnp.float32)

    # static block-diagonal batch mask (token attends only within its batch),
    # replicated across the H column blocks; built with shifts, no int divides.
    r = jax.lax.broadcasted_iota(jnp.int32, (BS, H * BS), 0)
    c = jax.lax.broadcasted_iota(jnp.int32, (BS, H * BS), 1)
    same_batch = (r >> S_SH) == ((c & (BS - 1)) >> S_SH)
    scores = jnp.where(same_batch, scores, NEG_BIG)

    # --- single softmax pass over the whole slab ------------------------------
    # One row max across all heads keeps exp() stable (heads share the same
    # scale here); per-head denominators are recovered with one matmul against
    # the 0/1 selector, then divided out of the unnormalized context.
    m = jnp.max(scores, axis=-1, keepdims=True)
    e = jnp.exp(scores - m)                            # masked entries -> exactly 0
    ctx = jnp.dot(e, v_bd, preferred_element_type=jnp.float32)      # (BS, D) unnormalized
    denom = jnp.dot(e, bd_sel, preferred_element_type=jnp.float32)  # (BS, D) per-head sums
    ctx = ctx * pl.reciprocal(denom)                   # exact reciprocal

    attn_out = jnp.dot(ctx, wo, preferred_element_type=jnp.float32) + bo

    # --- residual + layernorm 1 ------------------------------------------------
    x1 = _layernorm(x + attn_out, g1, be1)

    # --- feed forward -----------------------------------------------------------
    h1 = jnp.maximum(jnp.dot(x1, w1, preferred_element_type=jnp.float32) + b1, 0.0)
    ff = jnp.dot(h1, w2_ref[...], preferred_element_type=jnp.float32) + b2

    # --- residual + layernorm 2 -------------------------------------------------
    o_ref[...] = _layernorm(x1 + ff, g2, be2)


def transformer_block(x, packed):
    """x: (B, S, D) f32. packed: dict with w_big, w2, smalls."""
    x2 = x.reshape(BS, D)   # row-dense 2-D slab; reshape happens outside the kernel
    out2 = pl.pallas_call(
        transformer_block_kernel,
        out_shape=jax.ShapeDtypeStruct((BS, D), jnp.float32),
        # no grid / BlockSpecs: whole-array VMEM refs, no pipeline machinery
    )(x2, packed["w_big"], packed["w2"], packed["smalls"])
    return out2.reshape(B, S, D)


transformer_block_jit = jax.jit(transformer_block)


def make_params(key):
    ks = jax.random.split(key, 12)
    sc = 0.05
    return {
        "wq": sc * jax.random.normal(ks[0], (D, D), jnp.float32),
        "bq": sc * jax.random.normal(ks[1], (1, D), jnp.float32),
        "wk": sc * jax.random.normal(ks[2], (D, D), jnp.float32),
        "bk": sc * jax.random.normal(ks[3], (1, D), jnp.float32),
        "wv": sc * jax.random.normal(ks[4], (D, D), jnp.float32),
        "bv": sc * jax.random.normal(ks[5], (1, D), jnp.float32),
        "wo": sc * jax.random.normal(ks[6], (D, D), jnp.float32),
        "bo": sc * jax.random.normal(ks[7], (1, D), jnp.float32),
        "w1": sc * jax.random.normal(ks[8], (D, FF), jnp.float32),
        "b1": sc * jax.random.normal(ks[9], (1, FF), jnp.float32),
        "w2": sc * jax.random.normal(ks[10], (FF, D), jnp.float32),
        "b2": sc * jax.random.normal(ks[11], (1, D), jnp.float32),
        # LayerNorm affine params: PyTorch default init (ones / zeros)
        "g1": jnp.ones((1, D), jnp.float32),
        "be1": jnp.zeros((1, D), jnp.float32),
        "g2": jnp.ones((1, D), jnp.float32),
        "be2": jnp.zeros((1, D), jnp.float32),
    }


def pack_params(p):
    """Pack logical params into the kernel's fused slabs (done once, host-side)."""
    # fold the attention 1/sqrt(dk) scale into the query projection
    wq_s = p["wq"] * INV_SCALE
    bq_s = p["bq"] * INV_SCALE
    wqkv = jnp.concatenate([wq_s, p["wk"], p["wv"]], axis=1)          # (D, 3D)
    w_big = jnp.concatenate([wqkv, p["wo"], p["w1"]], axis=1)         # (D, 3D+D+FF)
    bqkv = jnp.concatenate([bq_s, p["bk"], p["bv"]], axis=1)[0]       # (3D,)
    smalls = jnp.zeros((8, 3 * D), jnp.float32)
    smalls = smalls.at[0, :].set(bqkv)
    smalls = smalls.at[1, :D].set(p["bo"][0])
    smalls = smalls.at[2, :FF].set(p["b1"][0])
    smalls = smalls.at[3, :D].set(p["b2"][0])
    smalls = smalls.at[4, :D].set(p["g1"][0])
    smalls = smalls.at[5, :D].set(p["be1"][0])
    smalls = smalls.at[6, :D].set(p["g2"][0])
    smalls = smalls.at[7, :D].set(p["be2"][0])
    return {"w_big": w_big, "w2": p["w2"], "smalls": smalls}


def reference(x, p):
    """Pure-JAX reference matching the PyTorch forward (dropout = identity)."""
    def ln(t, g, b):
        mu = jnp.mean(t, -1, keepdims=True)
        var = jnp.mean((t - mu) ** 2, -1, keepdims=True)
        return (t - mu) / jnp.sqrt(var + EPS) * g + b

    q = x @ p["wq"] + p["bq"]
    k = x @ p["wk"] + p["bk"]
    v = x @ p["wv"] + p["bv"]
    qh = q.reshape(B, S, H, DK).transpose(0, 2, 1, 3)
    kh = k.reshape(B, S, H, DK).transpose(0, 2, 1, 3)
    vh = v.reshape(B, S, H, DK).transpose(0, 2, 1, 3)
    scores = jnp.einsum("bhqd,bhkd->bhqk", qh, kh) / math.sqrt(DK)
    attn = jax.nn.softmax(scores, axis=-1)
    ctx = jnp.einsum("bhqk,bhkd->bhqd", attn, vh)
    ctx = ctx.transpose(0, 2, 1, 3).reshape(B, S, D)
    attn_out = ctx @ p["wo"] + p["bo"]
    x1 = ln(x + attn_out, p["g1"], p["be1"])
    ff = jnp.maximum(x1 @ p["w1"] + p["b1"], 0.0) @ p["w2"] + p["b2"]
    return ln(x1 + ff, p["g2"], p["be2"])


if __name__ == "__main__":
    key = jax.random.PRNGKey(0)
    kx, kp = jax.random.split(key)
    x = jax.random.normal(kx, (B, S, D), jnp.float32)
    params = make_params(kp)
    packed = pack_params(params)

    out = transformer_block_jit(x, packed)
    out = jax.block_until_ready(out)

    ref = reference(x, params)
    np.testing.assert_allclose(np.asarray(out), np.asarray(ref),
                               rtol=1e-4, atol=1e-4)
    print("KERNEL_OK")
</pallas_src>

<mosaic_0001>
module attributes {stable_mosaic.version = 11 : i64} {
  func.func @transformer_block_kernel(%arg0: memref<16x32xf32, #tpu.memory_space<vmem>>, %arg1: memref<32x192xf32, #tpu.memory_space<vmem>>, %arg2: memref<64x32xf32, #tpu.memory_space<vmem>>, %arg3: memref<8x96xf32, #tpu.memory_space<vmem>>, %arg4: memref<16x32xf32, #tpu.memory_space<vmem>>) attributes {dimension_semantics = [], scalar_prefetch = 0 : i64, scratch_operands = 0 : i64, tpu.core_type = #tpu.core_type<tc>} {
    %c0 = arith.constant 0 : index
    %c0_0 = arith.constant 0 : index
    %0 = vector.load %arg0[%c0, %c0_0] : memref<16x32xf32, #tpu.memory_space<vmem>>, vector<16x32xf32>
    %c0_1 = arith.constant 0 : index
    %c0_2 = arith.constant 0 : index
    %1 = vector.load %arg1[%c0_1, %c0_2] : memref<32x192xf32, #tpu.memory_space<vmem>>, vector<32x96xf32>
    %c0_3 = arith.constant 0 : index
    %c96 = arith.constant 96 : index
    %2 = vector.load %arg1[%c0_3, %c96] : memref<32x192xf32, #tpu.memory_space<vmem>>, vector<32x32xf32>
    %c0_4 = arith.constant 0 : index
    %c128 = arith.constant 128 : index
    %3 = vector.load %arg1[%c0_4, %c128] : memref<32x192xf32, #tpu.memory_space<vmem>>, vector<32x64xf32>
    %c0_5 = arith.constant 0 : index
    %c0_6 = arith.constant 0 : index
    %4 = vector.load %arg3[%c0_5, %c0_6] : memref<8x96xf32, #tpu.memory_space<vmem>>, vector<8x96xf32>
    %5 = vector.extract_strided_slice %4 {offsets = [0, 0], sizes = [1, 96], strides = [1, 1]} : vector<8x96xf32> to vector<1x96xf32>
    %6 = vector.extract_strided_slice %4 {offsets = [1, 0], sizes = [1, 32], strides = [1, 1]} : vector<8x96xf32> to vector<1x32xf32>
    %7 = vector.extract_strided_slice %4 {offsets = [2, 0], sizes = [1, 64], strides = [1, 1]} : vector<8x96xf32> to vector<1x64xf32>
    %8 = vector.extract_strided_slice %4 {offsets = [3, 0], sizes = [1, 32], strides = [1, 1]} : vector<8x96xf32> to vector<1x32xf32>
    %9 = vector.extract_strided_slice %4 {offsets = [4, 0], sizes = [1, 32], strides = [1, 1]} : vector<8x96xf32> to vector<1x32xf32>
    %10 = vector.extract_strided_slice %4 {offsets = [5, 0], sizes = [1, 32], strides = [1, 1]} : vector<8x96xf32> to vector<1x32xf32>
    %11 = vector.extract_strided_slice %4 {offsets = [6, 0], sizes = [1, 32], strides = [1, 1]} : vector<8x96xf32> to vector<1x32xf32>
    %12 = vector.extract_strided_slice %4 {offsets = [7, 0], sizes = [1, 32], strides = [1, 1]} : vector<8x96xf32> to vector<1x32xf32>
    %cst = arith.constant dense<0.000000e+00> : vector<16x96xf32>
    %13 = tpu.matmul %0, %1, %cst {dimension_numbers = #tpu.dot_dimension_numbers<[1], [0], [0], [1], [0, 0, 1, 1], [], []>} : vector<16x32xf32>, vector<32x96xf32>, vector<16x96xf32> -> vector<16x96xf32>
    %14 = vector.broadcast %5 : vector<1x96xf32> to vector<16x96xf32>
    %15 = arith.addf %13, %14 : vector<16x96xf32>
    %16 = vector.extract_strided_slice %15 {offsets = [0, 0], sizes = [16, 32], strides = [1, 1]} : vector<16x96xf32> to vector<16x32xf32>
    %17 = vector.extract_strided_slice %15 {offsets = [0, 32], sizes = [16, 32], strides = [1, 1]} : vector<16x96xf32> to vector<16x32xf32>
    %18 = vector.extract_strided_slice %15 {offsets = [0, 64], sizes = [16, 32], strides = [1, 1]} : vector<16x96xf32> to vector<16x32xf32>
    %19 = tpu.iota {dimensions = array<i32: 0>} : vector<64x32xi32>
    %20 = tpu.iota {dimensions = array<i32: 1>} : vector<64x32xi32>
    %c4_i32 = arith.constant 4 : i32
    %21 = vector.broadcast %c4_i32 : i32 to vector<64x32xi32>
    %22 = arith.shrsi %19, %21 : vector<64x32xi32>
    %c3_i32 = arith.constant 3 : i32
    %23 = vector.broadcast %c3_i32 : i32 to vector<64x32xi32>
    %24 = arith.shrsi %20, %23 : vector<64x32xi32>
    %25 = arith.cmpi eq, %22, %24 : vector<64x32xi32>
    %cst_7 = arith.constant 1.000000e+00 : f32
    %cst_8 = arith.constant 0.000000e+00 : f32
    %26 = vector.broadcast %cst_7 : f32 to vector<64x32xf32>
    %27 = vector.broadcast %cst_8 : f32 to vector<64x32xf32>
    %28 = arith.select %25, %26, %27 : vector<64x32xi1>, vector<64x32xf32>
    %29 = tpu.concatenate %17, %17, %17, %17 in 0 : vector<16x32xf32>, vector<16x32xf32>, vector<16x32xf32>, vector<16x32xf32> -> vector<64x32xf32>
    %30 = arith.mulf %29, %28 : vector<64x32xf32>
    %31 = tpu.concatenate %18, %18, %18, %18 in 0 : vector<16x32xf32>, vector<16x32xf32>, vector<16x32xf32>, vector<16x32xf32> -> vector<64x32xf32>
    %32 = arith.mulf %31, %28 : vector<64x32xf32>
    %cst_9 = arith.constant dense<0.000000e+00> : vector<16x64xf32>
    %33 = tpu.matmul %16, %30, %cst_9 {dimension_numbers = #tpu.dot_dimension_numbers<[1], [1], [0], [0], [0, 0, 1, 0], [], []>} : vector<16x32xf32>, vector<64x32xf32>, vector<16x64xf32> -> vector<16x64xf32>
    %34 = tpu.iota {dimensions = array<i32: 0>} : vector<16x64xi32>
    %35 = tpu.iota {dimensions = array<i32: 1>} : vector<16x64xi32>
    %c3_i32_10 = arith.constant 3 : i32
    %36 = vector.broadcast %c3_i32_10 : i32 to vector<16x64xi32>
    %37 = arith.shrsi %34, %36 : vector<16x64xi32>
    %c15_i32 = arith.constant 15 : i32
    %38 = vector.broadcast %c15_i32 : i32 to vector<16x64xi32>
    %39 = arith.andi %35, %38 : vector<16x64xi32>
    %c3_i32_11 = arith.constant 3 : i32
    %40 = vector.broadcast %c3_i32_11 : i32 to vector<16x64xi32>
    %41 = arith.shrsi %39, %40 : vector<16x64xi32>
    %42 = arith.cmpi eq, %37, %41 : vector<16x64xi32>
    %cst_12 = arith.constant -1.000000e+30 : f32
    %43 = vector.broadcast %cst_12 : f32 to vector<16x64xf32>
    %44 = arith.select %42, %33, %43 : vector<16x64xi1>, vector<16x64xf32>
    %cst_13 = arith.constant dense<0xFF800000> : vector<16xf32>
    %45 = vector.multi_reduction <maximumf>, %44, %cst_13 [1] : vector<16x64xf32> to vector<16xf32>
    %46 = vector.shape_cast %45 : vector<16xf32> to vector<16x1xf32>
    %47 = vector.broadcast %46 : vector<16x1xf32> to vector<16x64xf32>
    %48 = arith.subf %44, %47 : vector<16x64xf32>
    %49 = math.exp %48 : vector<16x64xf32>
    %cst_14 = arith.constant dense<0.000000e+00> : vector<16x32xf32>
    %50 = tpu.matmul %49, %32, %cst_14 {dimension_numbers = #tpu.dot_dimension_numbers<[1], [0], [0], [1], [0, 0, 1, 1], [], []>} : vector<16x64xf32>, vector<64x32xf32>, vector<16x32xf32> -> vector<16x32xf32>
    %cst_15 = arith.constant dense<0.000000e+00> : vector<16x32xf32>
    %51 = tpu.matmul %49, %28, %cst_15 {dimension_numbers = #tpu.dot_dimension_numbers<[1], [0], [0], [1], [0, 0, 1, 1], [], []>} : vector<16x64xf32>, vector<64x32xf32>, vector<16x32xf32> -> vector<16x32xf32>
    %52 = tpu.reciprocal %51 : vector<16x32xf32> -> vector<16x32xf32>
    %53 = arith.mulf %50, %52 : vector<16x32xf32>
    %cst_16 = arith.constant dense<0.000000e+00> : vector<16x32xf32>
    %54 = tpu.matmul %53, %2, %cst_16 {dimension_numbers = #tpu.dot_dimension_numbers<[1], [0], [0], [1], [0, 0, 1, 1], [], []>} : vector<16x32xf32>, vector<32x32xf32>, vector<16x32xf32> -> vector<16x32xf32>
    %55 = vector.broadcast %6 : vector<1x32xf32> to vector<16x32xf32>
    %56 = arith.addf %54, %55 : vector<16x32xf32>
    %57 = arith.addf %0, %56 : vector<16x32xf32>
    %cst_17 = arith.constant dense<0.000000e+00> : vector<16xf32>
    %58 = vector.multi_reduction <add>, %57, %cst_17 [1] : vector<16x32xf32> to vector<16xf32>
    %59 = vector.shape_cast %58 : vector<16xf32> to vector<16x1xf32>
    %cst_18 = arith.constant 3.200000e+01 : f32
    %60 = vector.broadcast %cst_18 : f32 to vector<16x1xf32>
    %61 = arith.divf %59, %60 : vector<16x1xf32>
    %62 = vector.broadcast %61 : vector<16x1xf32> to vector<16x32xf32>
    %63 = arith.subf %57, %62 : vector<16x32xf32>
    %64 = arith.mulf %63, %63 : vector<16x32xf32>
    %cst_19 = arith.constant dense<0.000000e+00> : vector<16xf32>
    %65 = vector.multi_reduction <add>, %64, %cst_19 [1] : vector<16x32xf32> to vector<16xf32>
    %66 = vector.shape_cast %65 : vector<16xf32> to vector<16x1xf32>
    %cst_20 = arith.constant 3.200000e+01 : f32
    %67 = vector.broadcast %cst_20 : f32 to vector<16x1xf32>
    %68 = arith.divf %66, %67 : vector<16x1xf32>
    %cst_21 = arith.constant 9.99999974E-6 : f32
    %69 = vector.broadcast %cst_21 : f32 to vector<16x1xf32>
    %70 = arith.addf %68, %69 : vector<16x1xf32>
    %71 = math.rsqrt %70 : vector<16x1xf32>
    %72 = vector.broadcast %71 : vector<16x1xf32> to vector<16x32xf32>
    %73 = arith.mulf %63, %72 : vector<16x32xf32>
    %74 = vector.broadcast %9 : vector<1x32xf32> to vector<16x32xf32>
    %75 = arith.mulf %73, %74 : vector<16x32xf32>
    %76 = vector.broadcast %10 : vector<1x32xf32> to vector<16x32xf32>
    %77 = arith.addf %75, %76 : vector<16x32xf32>
    %cst_22 = arith.constant dense<0.000000e+00> : vector<16x64xf32>
    %78 = tpu.matmul %77, %3, %cst_22 {dimension_numbers = #tpu.dot_dimension_numbers<[1], [0], [0], [1], [0, 0, 1, 1], [], []>} : vector<16x32xf32>, vector<32x64xf32>, vector<16x64xf32> -> vector<16x64xf32>
    %79 = vector.broadcast %7 : vector<1x64xf32> to vector<16x64xf32>
    %80 = arith.addf %78, %79 : vector<16x64xf32>
    %cst_23 = arith.constant 0.000000e+00 : f32
    %81 = vector.broadcast %cst_23 : f32 to vector<16x64xf32>
    %82 = arith.maximumf %80, %81 : vector<16x64xf32>
    %c0_24 = arith.constant 0 : index
    %c0_25 = arith.constant 0 : index
    %83 = vector.load %arg2[%c0_24, %c0_25] : memref<64x32xf32, #tpu.memory_space<vmem>>, vector<64x32xf32>
    %cst_26 = arith.constant dense<0.000000e+00> : vector<16x32xf32>
    %84 = tpu.matmul %82, %83, %cst_26 {dimension_numbers = #tpu.dot_dimension_numbers<[1], [0], [0], [1], [0, 0, 1, 1], [], []>} : vector<16x64xf32>, vector<64x32xf32>, vector<16x32xf32> -> vector<16x32xf32>
    %85 = vector.broadcast %8 : vector<1x32xf32> to vector<16x32xf32>
    %86 = arith.addf %84, %85 : vector<16x32xf32>
    %87 = arith.addf %77, %86 : vector<16x32xf32>
    %cst_27 = arith.constant dense<0.000000e+00> : vector<16xf32>
    %88 = vector.multi_reduction <add>, %87, %cst_27 [1] : vector<16x32xf32> to vector<16xf32>
    %89 = vector.shape_cast %88 : vector<16xf32> to vector<16x1xf32>
    %cst_28 = arith.constant 3.200000e+01 : f32
    %90 = vector.broadcast %cst_28 : f32 to vector<16x1xf32>
    %91 = arith.divf %89, %90 : vector<16x1xf32>
    %92 = vector.broadcast %91 : vector<16x1xf32> to vector<16x32xf32>
    %93 = arith.subf %87, %92 : vector<16x32xf32>
    %94 = arith.mulf %93, %93 : vector<16x32xf32>
    %cst_29 = arith.constant dense<0.000000e+00> : vector<16xf32>
    %95 = vector.multi_reduction <add>, %94, %cst_29 [1] : vector<16x32xf32> to vector<16xf32>
    %96 = vector.shape_cast %95 : vector<16xf32> to vector<16x1xf32>
    %cst_30 = arith.constant 3.200000e+01 : f32
    %97 = vector.broadcast %cst_30 : f32 to vector<16x1xf32>
    %98 = arith.divf %96, %97 : vector<16x1xf32>
    %cst_31 = arith.constant 9.99999974E-6 : f32
    %99 = vector.broadcast %cst_31 : f32 to vector<16x1xf32>
    %100 = arith.addf %98, %99 : vector<16x1xf32>
    %101 = math.rsqrt %100 : vector<16x1xf32>
    %102 = vector.broadcast %101 : vector<16x1xf32> to vector<16x32xf32>
    %103 = arith.mulf %93, %102 : vector<16x32xf32>
    %104 = vector.broadcast %11 : vector<1x32xf32> to vector<16x32xf32>
    %105 = arith.mulf %103, %104 : vector<16x32xf32>
    %106 = vector.broadcast %12 : vector<1x32xf32> to vector<16x32xf32>
    %107 = arith.addf %105, %106 : vector<16x32xf32>
    %c0_32 = arith.constant 0 : index
    %c0_33 = arith.constant 0 : index
    %108 = vector.load %arg4[%c0_32, %c0_33] : memref<16x32xf32, #tpu.memory_space<vmem>>, vector<16x32xf32>
    tpu.vector_store %arg4[%c0_32, %c0_33], %107 {strides = array<i32>} : memref<16x32xf32, #tpu.memory_space<vmem>>, vector<16x32xf32>,
    return
  }
}

</mosaic_0001>

<llo_original>
// kernel: transformer_block.1
$region0: #{transformer_block.1}
  #allocation0 [shape = 'u32[]', space=smem, size = 0x4, offset = 0x4, fixed_abs, tag = 'smem constant byte address 0x4 - core index']
  #allocation1 [shape = 'u32[144,128]{1,0:T(1,128)}', space=vmem, size = 0x12000, scoped, tag = 'internal scratch']
  %s0 = inlined_call_operand.vmem [shape: f32[16,32], index: 0, kind: input, shape index: {}]
  %s1 = inlined_call_operand.vmem [shape: f32[32,192], index: 1, kind: input, shape index: {}]
  %s2 = inlined_call_operand.vmem [shape: f32[64,32], index: 2, kind: input, shape index: {}]
  %s3 = inlined_call_operand.vmem [shape: f32[8,96], index: 3, kind: input, shape index: {}]
  %s4 = inlined_call_operand.hbm [shape: f32[16,32], index: 4, kind: output, shape index: {}]
  %s5 = sld [smem:[#allocation0]]
  $region26: #{transformer_block.1} parent=0
    _
  %s7 = ssub.s32 1, %s5
  %s8 = scalar_select 0, %s7, %s5
  $region1: #{transformer_block.1} parent=0
    #allocation2 [shape = 'u8[8192]{0}', space=vmem, size = 0x2000, scoped, tag = 'output window, operand 0, single buffered']
    #allocation3 [shape = 's32[1]{0}', space=sflag, size = 0x4, scoped, tag = 'scoped memory for transformer_block.1']
    %9 = vsyncpa [#allocation3], 0
    // Predicated region
    $region2: #{transformer_block.1} parent=1 // pred_check
      _
    $region3: #{transformer_block.1} parent=1 // pred_check_branch
      %11 = sbr.rel (0) target = $region5
    $region4: #{transformer_block.1} parent=1 // pred_region
      _
    $region5: #{transformer_block.1} parent=1 // pred_fallthru
      _
    // Predicated region
    $region6: #{transformer_block.1} parent=1 // pred_check
      _
    $region7: #{transformer_block.1} parent=1 // pred_check_branch
      %13 = sbr.rel (0) target = $region9
    $region8: #{transformer_block.1} parent=1 // pred_region
      _
    $region9: #{transformer_block.1} parent=1 // pred_fallthru
      _
    // Predicated region
    $region10: #{transformer_block.1} parent=1 // pred_check
      _
    $region11: #{transformer_block.1} parent=1 // pred_check_branch
      %15 = sbr.rel (0) target = $region13
    $region12: #{transformer_block.1} parent=1 // pred_region
      _
    $region13: #{transformer_block.1} parent=1 // pred_fallthru
      _
    // Predicated region
    $region14: #{transformer_block.1} parent=1 // pred_check
      _
    $region15: #{transformer_block.1} parent=1 // pred_check_branch
      %17 = sbr.rel (0) target = $region17
    $region16: #{transformer_block.1} parent=1 // pred_region
      _
    $region17: #{transformer_block.1} parent=1 // pred_fallthru
      _
    %v18 = vld [vmem:[%s0] sm:$0xff]
    %v19 = vld [vmem:[%s0 + $0x8] sm:$0xff]
    %v20 = vld [vmem:[%s1] sm:$0xff]
    %v21 = vld [vmem:[%s1 + $0x10] sm:$0xff]
    %v22 = vld [vmem:[%s1 + $0x20] sm:$0xff]
    %v23 = vld [vmem:[%s1 + $0x30] sm:$0xff]
    %v24 = vld [vmem:[%s1 + $0x8] sm:$0xff]
    %v25 = vld [vmem:[%s1 + $0x18] sm:$0xff]
    %v26 = vld [vmem:[%s1 + $0x28] sm:$0xff]
    %v27 = vld [vmem:[%s1 + $0x38] sm:$0xff]
    %v28 = vld [vmem:[%s3] sm:$0xff]
    %v29 = vlaneseq
    %v30 = vshrl.u32 %v29, 7
    %v31 = vsub.s32 0, %v30
    %v32 = vrot.slane %v28, %v31
    %vm33 = vcmask 261120
    %v35 = vsel %vm33, %v18, 0
    %v38 = vsel %vm33, %v19, 0
    %40 = vmatprep.subr.mxu0 0.0
    %41 = vmatpush1.msra.mxu0 0.0
    %42 = vmatprep.subr.mxu0 0.0
    %43 = vmatpush1.msra.mxu0 0.0
    %44 = vmatprep.subr.mxu0 0.0
    %45 = vmatpush1.msra.mxu0 0.0
    %46 = vmatprep.subr.mxu0 0.0
    %47 = vmatpush1.msra.mxu0 0.0
    %48 = vmatprep.subr.mxu0 0.0
    %49 = vmatpush1.msra.mxu0 0.0
    %50 = vmatprep.subr.mxu0 0.0
    %51 = vmatpush1.msra.mxu0 0.0
    %52 = vmatprep.subr.mxu0 0.0
    %53 = vmatpush1.msra.mxu0 0.0
    %54 = vmatprep.subr.mxu0 0.0
    %55 = vmatpush1.msra.mxu0 0.0
    %56 = vmatprep.subr.mxu0 0.0
    %57 = vmatpush1.msra.mxu0 0.0
    %58 = vmatprep.subr.mxu0 0.0
    %59 = vmatpush1.msra.mxu0 0.0
    %60 = vmatprep.subr.mxu0 0.0
    %61 = vmatpush1.msra.mxu0 0.0
    %62 = vmatprep.subr.mxu0 0.0
    %63 = vmatpush1.msra.mxu0 0.0
    %64 = vmatprep.subr.mxu0 0.0
    %65 = vmatpush1.msra.mxu0 %v23
    %66 = vmatprep.subr.mxu0 0.0
    %67 = vmatpush1.msra.mxu0 %v22
    %68 = vmatprep.subr.mxu0 0.0
    %69 = vmatpush1.msra.mxu0 %v21
    %70 = vmatprep.subr.mxu0 0.0
    %71 = vmatpush1.msra.mxu0 %v20
    %72 = vmatprep.subr.mxu0 0.0
    %73 = vmatpush2.msra.mxu0 0.0
    %74 = vmatprep.subr.mxu0 0.0
    %75 = vmatpush2.msra.mxu0 0.0
    %76 = vmatprep.subr.mxu0 0.0
    %77 = vmatpush2.msra.mxu0 0.0
    %78 = vmatprep.subr.mxu0 0.0
    %79 = vmatpush2.msra.mxu0 0.0
    %80 = vmatprep.subr.mxu0 0.0
    %81 = vmatpush2.msra.mxu0 0.0
    %82 = vmatprep.subr.mxu0 0.0
    %83 = vmatpush2.msra.mxu0 0.0
    %84 = vmatprep.subr.mxu0 0.0
    %85 = vmatpush2.msra.mxu0 0.0
    %86 = vmatprep.subr.mxu0 0.0
    %87 = vmatpush2.msra.mxu0 0.0
    %88 = vmatprep.subr.mxu0 0.0
    %89 = vmatpush2.msra.mxu0 0.0
    %90 = vmatprep.subr.mxu0 0.0
    %91 = vmatpush2.msra.mxu0 0.0
    %92 = vmatprep.subr.mxu0 0.0
    %93 = vmatpush2.msra.mxu0 0.0
    %94 = vmatprep.subr.mxu0 0.0
    %95 = vmatpush2.msra.mxu0 0.0
    %96 = vmatprep.subr.mxu0 0.0
    %97 = vmatpush2.msra.mxu0 0.0
    %98 = vmatprep.subr.mxu0 0.0
    %99 = vmatpush2.msra.mxu0 0.0
    %100 = vmatprep.subr.mxu0 0.0
    %101 = vmatpush2.msra.mxu0 0.0
    %102 = vmatprep.subr.mxu0 0.0
    %103 = vmatpush2.msra.mxu0 0.0
    %104 = vmatprep.mubr.f32.mxu0 0.0
    %105 = vmatmul.mubr.f32.gmra.mxu0 %v35
    %v106 = vpop.f32.mrf.mxu0
    %v107 = vadd.f32 %v32, %v106
    %v108 = vpop.f32.mrf.mxu0
    %109 = vmatprep.mubr.f32.mxu0 0.0
    %110 = vmatmul.mubr.f32.gmra.mxu0 %v38
    %v111 = vpop.f32.mrf.mxu0
    %v112 = vadd.f32 %v32, %v111
    %v113 = vpop.f32.mrf.mxu0
    %114 = vdwg.mxu0
    %v115 = vlaneseq
    %v116 = vshrl.u32 %v115, 7
    %v117 = vadd.s32 %v116, 8
    %v118 = vadd.s32 %v116, 16
    %v119 = vadd.s32 %v116, 24
    %v120 = vadd.s32 %v116, 32
    %v121 = vadd.s32 %v116, 40
    %v122 = vadd.s32 %v116, 48
    %v123 = vadd.s32 %v116, 56
    %v124 = vlaneseq
    %v125 = vand.u32 %v124, 127
    %v126 = vshra.s32 %v116, 4
    %v127 = vshra.s32 %v117, 4
    %v128 = vshra.s32 %v118, 4
    %v129 = vshra.s32 %v119, 4
    %v130 = vshra.s32 %v120, 4
    %v131 = vshra.s32 %v121, 4
    %v132 = vshra.s32 %v122, 4
    %v133 = vshra.s32 %v123, 4
    %v134 = vshra.s32 %v125, 3
    %vm135 = vcmp.eq.s32.totalorder %v126, %v134
    %vm136 = vcmp.eq.s32.totalorder %v127, %v134
    %vm137 = vcmp.eq.s32.totalorder %v128, %v134
    %vm138 = vcmp.eq.s32.totalorder %v129, %v134
    %vm139 = vcmp.eq.s32.totalorder %v130, %v134
    %vm140 = vcmp.eq.s32.totalorder %v131, %v134
    %vm141 = vcmp.eq.s32.totalorder %v132, %v134
    %vm142 = vcmp.eq.s32.totalorder %v133, %v134
    %v143 = vsel %vm135, 1.0, 0.0
    %v144 = vsel %vm136, 1.0, 0.0
    %v145 = vsel %vm137, 1.0, 0.0
    %v146 = vsel %vm138, 1.0, 0.0
    %v147 = vsel %vm139, 1.0, 0.0
    %v148 = vsel %vm140, 1.0, 0.0
    %v149 = vsel %vm141, 1.0, 0.0
    %v150 = vsel %vm142, 1.0, 0.0
    %159 = vrot.lane.b32.xlu0 %v143, 32
    %v160 = vpop.permute.xlu0 %159
    %161 = vrot.lane.b32.xlu0 %v144, 32
    %v162 = vpop.permute.xlu0 %161
    %163 = vrot.lane.b32.xlu0 %v145, 32
    %v164 = vpop.permute.xlu0 %163
    %165 = vrot.lane.b32.xlu0 %v146, 32
    %v166 = vpop.permute.xlu0 %165
    %167 = vrot.lane.b32.xlu0 %v147, 32
    %v168 = vpop.permute.xlu0 %167
    %169 = vrot.lane.b32.xlu0 %v148, 32
    %v170 = vpop.permute.xlu0 %169
    %171 = vrot.lane.b32.xlu0 %v149, 32
    %v172 = vpop.permute.xlu0 %171
    %173 = vrot.lane.b32.xlu0 %v150, 32
    %v174 = vpop.permute.xlu0 %173
    %v183 = vmul.f32 %v107, %v160
    %v184 = vmul.f32 %v112, %v162
    %v185 = vmul.f32 %v107, %v164
    %v186 = vmul.f32 %v112, %v166
    %v187 = vmul.f32 %v107, %v168
    %v188 = vmul.f32 %v112, %v170
    %v189 = vmul.f32 %v107, %v172
    %v190 = vmul.f32 %v112, %v174
    %191 = vrot.lane.b32.xlu0 %v143, 64
    %v192 = vpop.permute.xlu0 %191
    %193 = vrot.lane.b32.xlu0 %v144, 64
    %v194 = vpop.permute.xlu0 %193
    %195 = vrot.lane.b32.xlu0 %v145, 64
    %v196 = vpop.permute.xlu0 %195
    %197 = vrot.lane.b32.xlu0 %v146, 64
    %v198 = vpop.permute.xlu0 %197
    %199 = vrot.lane.b32.xlu0 %v147, 64
    %v200 = vpop.permute.xlu0 %199
    %201 = vrot.lane.b32.xlu0 %v148, 64
    %v202 = vpop.permute.xlu0 %201
    %203 = vrot.lane.b32.xlu0 %v149, 64
    %v204 = vpop.permute.xlu0 %203
    %205 = vrot.lane.b32.xlu0 %v150, 64
    %v206 = vpop.permute.xlu0 %205
    %v215 = vmul.f32 %v107, %v192
    %v216 = vmul.f32 %v112, %v194
    %v217 = vmul.f32 %v107, %v196
    %v218 = vmul.f32 %v112, %v198
    %v219 = vmul.f32 %v107, %v200
    %v220 = vmul.f32 %v112, %v202
    %v221 = vmul.f32 %v107, %v204
    %v222 = vmul.f32 %v112, %v206
    %231 = vrot.lane.b32.xlu0 %v183, 96
    %v232 = vpop.permute.xlu0 %231
    %233 = vrot.lane.b32.xlu0 %v184, 96
    %v234 = vpop.permute.xlu0 %233
    %235 = vrot.lane.b32.xlu0 %v185, 96
    %v236 = vpop.permute.xlu0 %235
    %237 = vrot.lane.b32.xlu0 %v186, 96
    %v238 = vpop.permute.xlu0 %237
    %239 = vrot.lane.b32.xlu0 %v187, 96
    %v240 = vpop.permute.xlu0 %239
    %241 = vrot.lane.b32.xlu0 %v188, 96
    %v242 = vpop.permute.xlu0 %241
    %243 = vrot.lane.b32.xlu0 %v189, 96
    %v244 = vpop.permute.xlu0 %243
    %245 = vrot.lane.b32.xlu0 %v190, 96
    %v246 = vpop.permute.xlu0 %245
    %v248 = vsel %vm33, %v107, 0
    %v251 = vsel %vm33, %v112, 0
    %v253 = vsel %vm33, %v232, 0
    %v255 = vsel %vm33, %v234, 0
    %v257 = vsel %vm33, %v236, 0
    %v259 = vsel %vm33, %v238, 0
    %v261 = vsel %vm33, %v240, 0
    %v263 = vsel %vm33, %v242, 0
    %v265 = vsel %vm33, %v244, 0
    %v267 = vsel %vm33, %v246, 0
    %269 = vmatprep.subr.mxu0 0.0
    %270 = vmatpush1.xpose.msra.mxu0 0.0
    %271 = vmatprep.subr.mxu0 0.0
    %272 = vmatpush1.xpose.msra.mxu0 0.0
    %273 = vmatprep.subr.mxu0 0.0
    %274 = vmatpush1.xpose.msra.mxu0 0.0
    %275 = vmatprep.subr.mxu0 0.0
    %276 = vmatpush1.xpose.msra.mxu0 0.0
    %277 = vmatprep.subr.mxu0 0.0
    %278 = vmatpush1.xpose.msra.mxu0 0.0
    %279 = vmatprep.subr.mxu0 0.0
    %280 = vmatpush1.xpose.msra.mxu0 0.0
    %281 = vmatprep.subr.mxu0 0.0
    %282 = vmatpush1.xpose.msra.mxu0 0.0
    %283 = vmatprep.subr.mxu0 0.0
    %284 = vmatpush1.xpose.msra.mxu0 0.0
    %285 = vmatprep.subr.mxu0 0.0
    %286 = vmatpush1.xpose.msra.mxu0 %v267
    %287 = vmatprep.subr.mxu0 0.0
    %288 = vmatpush1.xpose.msra.mxu0 %v265
    %289 = vmatprep.subr.mxu0 0.0
    %290 = vmatpush1.xpose.msra.mxu0 %v263
    %291 = vmatprep.subr.mxu0 0.0
    %292 = vmatpush1.xpose.msra.mxu0 %v261
    %293 = vmatprep.subr.mxu0 0.0
    %294 = vmatpush1.xpose.msra.mxu0 %v259
    %295 = vmatprep.subr.mxu0 0.0
    %296 = vmatpush1.xpose.msra.mxu0 %v257
    %297 = vmatprep.subr.mxu0 0.0
    %298 = vmatpush1.xpose.msra.mxu0 %v255
    %299 = vmatprep.subr.mxu0 0.0
    %300 = vmatpush1.xpose.msra.mxu0 %v253
    %301 = vmatprep.subr.mxu0 0.0
    %302 = vmatpush2.xpose.msra.mxu0 0.0
    %303 = vmatprep.subr.mxu0 0.0
    %304 = vmatpush2.xpose.msra.mxu0 0.0
    %305 = vmatprep.subr.mxu0 0.0
    %306 = vmatpush2.xpose.msra.mxu0 0.0
    %307 = vmatprep.subr.mxu0 0.0
    %308 = vmatpush2.xpose.msra.mxu0 0.0
    %309 = vmatprep.subr.mxu0 0.0
    %310 = vmatpush2.xpose.msra.mxu0 0.0
    %311 = vmatprep.subr.mxu0 0.0
    %312 = vmatpush2.xpose.msra.mxu0 0.0
    %313 = vmatprep.subr.mxu0 0.0
    %314 = vmatpush2.xpose.msra.mxu0 0.0
    %315 = vmatprep.subr.mxu0 0.0
    %316 = vmatpush2.xpose.msra.mxu0 0.0
    %317 = vmatprep.subr.mxu0 0.0
    %318 = vmatpush2.xpose.msra.mxu0 0.0
    %319 = vmatprep.subr.mxu0 0.0
    %320 = vmatpush2.xpose.msra.mxu0 0.0
    %321 = vmatprep.subr.mxu0 0.0
    %322 = vmatpush2.xpose.msra.mxu0 0.0
    %323 = vmatprep.subr.mxu0 0.0
    %324 = vmatpush2.xpose.msra.mxu0 0.0
    %325 = vmatprep.subr.mxu0 0.0
    %326 = vmatpush2.xpose.msra.mxu0 0.0
    %327 = vmatprep.subr.mxu0 0.0
    %328 = vmatpush2.xpose.msra.mxu0 0.0
    %329 = vmatprep.subr.mxu0 0.0
    %330 = vmatpush2.xpose.msra.mxu0 0.0
    %331 = vmatprep.subr.mxu0 0.0
    %332 = vmatpush2.xpose.msra.mxu0 0.0
    %333 = vmatprep.mubr.f32.mxu0 0.0
    %334 = vmatmul.mubr.f32.gmra.mxu0 %v248
    %v335 = vpop.f32.mrf.mxu0
    %v336 = vadd.f32 0.0, %v335
    %v337 = vpop.f32.mrf.mxu0
    %338 = vmatprep.mubr.f32.mxu0 0.0
    %339 = vmatmul.mubr.f32.gmra.mxu0 %v251
    %v340 = vpop.f32.mrf.mxu0
    %v341 = vadd.f32 0.0, %v340
    %v342 = vpop.f32.mrf.mxu0
    %343 = vdwg.mxu0
    %v344 = vshra.s32 %v116, 3
    %v345 = vshra.s32 %v117, 3
    %v346 = vand.u32 %v125, 15
    %v347 = vshra.s32 %v346, 3
    %vm348 = vcmp.eq.s32.totalorder %v344, %v347
    %vm349 = vcmp.eq.s32.totalorder %v345, %v347
    %v350 = vsel %vm348, %v336, -1e+30
    %v351 = vsel %vm349, %v341, -1e+30
    %vm352 = vcmask 523264
    %v353 = vsel %vm352, %v350, -inf
    %354 = vmax.xlane.f32.xlu0 %v353
    %v355 = vpop.xlane.xlu0 %354
    %v356 = vsel %vm352, %v351, -inf
    %357 = vmax.xlane.f32.xlu0 %v356
    %v358 = vpop.xlane.xlu0 %357
    %v359 = vsub.f32 %v350, %v355
    %v360 = vsub.f32 %v351, %v358
    %v361 = vmul.f32 %v359, 1.442695
    %v362 = vpow.pop %v361
    %v363 = vmul.f32 %v360, 1.442695
    %v364 = vpow.pop %v363
    %373 = vrot.lane.b32.xlu0 %v215, 64
    %v374 = vpop.permute.xlu0 %373
    %375 = vrot.lane.b32.xlu0 %v216, 64
    %v376 = vpop.permute.xlu0 %375
    %377 = vrot.lane.b32.xlu0 %v217, 64
    %v378 = vpop.permute.xlu0 %377
    %379 = vrot.lane.b32.xlu0 %v218, 64
    %v380 = vpop.permute.xlu0 %379
    %381 = vrot.lane.b32.xlu0 %v219, 64
    %v382 = vpop.permute.xlu0 %381
    %383 = vrot.lane.b32.xlu0 %v220, 64
    %v384 = vpop.permute.xlu0 %383
    %385 = vrot.lane.b32.xlu0 %v221, 64
    %v386 = vpop.permute.xlu0 %385
    %387 = vrot.lane.b32.xlu0 %v222, 64
    %v388 = vpop.permute.xlu0 %387
    %v398 = vsel %vm352, %v362, 0
    %v401 = vsel %vm352, %v364, 0
    %403 = vmatprep.subr.mxu0 0.0
    %404 = vmatpush1.msra.mxu0 0.0
    %405 = vmatprep.subr.mxu0 0.0
    %406 = vmatpush1.msra.mxu0 0.0
    %407 = vmatprep.subr.mxu0 0.0
    %408 = vmatpush1.msra.mxu0 0.0
    %409 = vmatprep.subr.mxu0 0.0
    %410 = vmatpush1.msra.mxu0 0.0
    %411 = vmatprep.subr.mxu0 0.0
    %412 = vmatpush1.msra.mxu0 0.0
    %413 = vmatprep.subr.mxu0 0.0
    %414 = vmatpush1.msra.mxu0 0.0
    %415 = vmatprep.subr.mxu0 0.0
    %416 = vmatpush1.msra.mxu0 0.0
    %417 = vmatprep.subr.mxu0 0.0
    %418 = vmatpush1.msra.mxu0 0.0
    %419 = vmatprep.subr.mxu0 0.0
    %420 = vmatpush1.msra.mxu0 %v388
    %421 = vmatprep.subr.mxu0 0.0
    %422 = vmatpush1.msra.mxu0 %v386
    %423 = vmatprep.subr.mxu0 0.0
    %424 = vmatpush1.msra.mxu0 %v384
    %425 = vmatprep.subr.mxu0 0.0
    %426 = vmatpush1.msra.mxu0 %v382
    %427 = vmatprep.subr.mxu0 0.0
    %428 = vmatpush1.msra.mxu0 %v380
    %429 = vmatprep.subr.mxu0 0.0
    %430 = vmatpush1.msra.mxu0 %v378
    %431 = vmatprep.subr.mxu0 0.0
    %432 = vmatpush1.msra.mxu0 %v376
    %433 = vmatprep.subr.mxu0 0.0
    %434 = vmatpush1.msra.mxu0 %v374
    %435 = vmatprep.subr.mxu0 0.0
    %436 = vmatpush2.msra.mxu0 0.0
    %437 = vmatprep.subr.mxu0 0.0
    %438 = vmatpush2.msra.mxu0 0.0
    %439 = vmatprep.subr.mxu0 0.0
    %440 = vmatpush2.msra.mxu0 0.0
    %441 = vmatprep.subr.mxu0 0.0
    %442 = vmatpush2.msra.mxu0 0.0
    %443 = vmatprep.subr.mxu0 0.0
    %444 = vmatpush2.msra.mxu0 0.0
    %445 = vmatprep.subr.mxu0 0.0
    %446 = vmatpush2.msra.mxu0 0.0
    %447 = vmatprep.subr.mxu0 0.0
    %448 = vmatpush2.msra.mxu0 0.0
    %449 = vmatprep.subr.mxu0 0.0
    %450 = vmatpush2.msra.mxu0 0.0
    %451 = vmatprep.subr.mxu0 0.0
    %452 = vmatpush2.msra.mxu0 0.0
    %453 = vmatprep.subr.mxu0 0.0
    %454 = vmatpush2.msra.mxu0 0.0
    %455 = vmatprep.subr.mxu0 0.0
    %456 = vmatpush2.msra.mxu0 0.0
    %457 = vmatprep.subr.mxu0 0.0
    %458 = vmatpush2.msra.mxu0 0.0
    %459 = vmatprep.subr.mxu0 0.0
    %460 = vmatpush2.msra.mxu0 0.0
    %461 = vmatprep.subr.mxu0 0.0
    %462 = vmatpush2.msra.mxu0 0.0
    %463 = vmatprep.subr.mxu0 0.0
    %464 = vmatpush2.msra.mxu0 0.0
    %465 = vmatprep.subr.mxu0 0.0
    %466 = vmatpush2.msra.mxu0 0.0
    %467 = vmatprep.mubr.f32.mxu0 0.0
    %468 = vmatmul.mubr.f32.gmra.mxu0 %v398
    %v469 = vpop.f32.mrf.mxu0
    %v470 = vadd.f32 0.0, %v469
    %v471 = vpop.f32.mrf.mxu0
    %472 = vmatprep.mubr.f32.mxu0 0.0
    %473 = vmatmul.mubr.f32.gmra.mxu0 %v401
    %v474 = vpop.f32.mrf.mxu0
    %v475 = vadd.f32 0.0, %v474
    %v476 = vpop.f32.mrf.mxu0
    %477 = vdwg.mxu0
    %478 = vmatprep.subr.mxu0 0.0
    %479 = vmatpush1.msra.mxu0 0.0
    %480 = vmatprep.subr.mxu0 0.0
    %481 = vmatpush1.msra.mxu0 0.0
    %482 = vmatprep.subr.mxu0 0.0
    %483 = vmatpush1.msra.mxu0 0.0
    %484 = vmatprep.subr.mxu0 0.0
    %485 = vmatpush1.msra.mxu0 0.0
    %486 = vmatprep.subr.mxu0 0.0
    %487 = vmatpush1.msra.mxu0 0.0
    %488 = vmatprep.subr.mxu0 0.0
    %489 = vmatpush1.msra.mxu0 0.0
    %490 = vmatprep.subr.mxu0 0.0
    %491 = vmatpush1.msra.mxu0 0.0
    %492 = vmatprep.subr.mxu0 0.0
    %493 = vmatpush1.msra.mxu0 0.0
    %494 = vmatprep.subr.mxu0 0.0
    %495 = vmatpush1.msra.mxu0 %v150
    %496 = vmatprep.subr.mxu0 0.0
    %497 = vmatpush1.msra.mxu0 %v149
    %498 = vmatprep.subr.mxu0 0.0
    %499 = vmatpush1.msra.mxu0 %v148
    %500 = vmatprep.subr.mxu0 0.0
    %501 = vmatpush1.msra.mxu0 %v147
    %502 = vmatprep.subr.mxu0 0.0
    %503 = vmatpush1.msra.mxu0 %v146
    %504 = vmatprep.subr.mxu0 0.0
    %505 = vmatpush1.msra.mxu0 %v145
    %506 = vmatprep.subr.mxu0 0.0
    %507 = vmatpush1.msra.mxu0 %v144
    %508 = vmatprep.subr.mxu0 0.0
    %509 = vmatpush1.msra.mxu0 %v143
    %510 = vmatprep.subr.mxu0 0.0
    %511 = vmatpush2.msra.mxu0 0.0
    %512 = vmatprep.subr.mxu0 0.0
    %513 = vmatpush2.msra.mxu0 0.0
    %514 = vmatprep.subr.mxu0 0.0
    %515 = vmatpush2.msra.mxu0 0.0
    %516 = vmatprep.subr.mxu0 0.0
    %517 = vmatpush2.msra.mxu0 0.0
    %518 = vmatprep.subr.mxu0 0.0
    %519 = vmatpush2.msra.mxu0 0.0
    %520 = vmatprep.subr.mxu0 0.0
    %521 = vmatpush2.msra.mxu0 0.0
    %522 = vmatprep.subr.mxu0 0.0
    %523 = vmatpush2.msra.mxu0 0.0
    %524 = vmatprep.subr.mxu0 0.0
    %525 = vmatpush2.msra.mxu0 0.0
    %526 = vmatprep.subr.mxu0 0.0
    %527 = vmatpush2.msra.mxu0 0.0
    %528 = vmatprep.subr.mxu0 0.0
    %529 = vmatpush2.msra.mxu0 0.0
    %530 = vmatprep.subr.mxu0 0.0
    %531 = vmatpush2.msra.mxu0 0.0
    %532 = vmatprep.subr.mxu0 0.0
    %533 = vmatpush2.msra.mxu0 0.0
    %534 = vmatprep.subr.mxu0 0.0
    %535 = vmatpush2.msra.mxu0 0.0
    %536 = vmatprep.subr.mxu0 0.0
    %537 = vmatpush2.msra.mxu0 0.0
    %538 = vmatprep.subr.mxu0 0.0
    %539 = vmatpush2.msra.mxu0 0.0
    %540 = vmatprep.subr.mxu0 0.0
    %541 = vmatpush2.msra.mxu0 0.0
    %542 = vmatprep.mubr.f32.mxu0 0.0
    %543 = vmatmul.mubr.f32.gmra.mxu0 %v398
    %v544 = vpop.f32.mrf.mxu0
    %v545 = vadd.f32 0.0, %v544
    %v546 = vpop.f32.mrf.mxu0
    %547 = vmatprep.mubr.f32.mxu0 0.0
    %548 = vmatmul.mubr.f32.gmra.mxu0 %v401
    %v549 = vpop.f32.mrf.mxu0
    %v550 = vadd.f32 0.0, %v549
    %v551 = vpop.f32.mrf.mxu0
    %552 = vdwg.mxu0
    %v553 = vrcp.pop %v545
    %v554 = vrcp.pop %v550
    %v555 = vmul.f32 %v470, %v553
    %v556 = vmul.f32 %v475, %v554
    %v557 = vlaneseq
    %v558 = vshrl.u32 %v557, 7
    %v559 = vsub.s32 1, %v558
    %v560 = vrot.slane %v28, %v559
    %565 = vrot.lane.b32.xlu0 %v20, 32
    %v566 = vpop.permute.xlu0 %565
    %567 = vrot.lane.b32.xlu0 %v21, 32
    %v568 = vpop.permute.xlu0 %567
    %569 = vrot.lane.b32.xlu0 %v22, 32
    %v570 = vpop.permute.xlu0 %569
    %571 = vrot.lane.b32.xlu0 %v23, 32
    %v572 = vpop.permute.xlu0 %571
    %v578 = vsel %vm33, %v555, 0
    %v581 = vsel %vm33, %v556, 0
    %583 = vmatprep.subr.mxu0 0.0
    %584 = vmatpush1.msra.mxu0 0.0
    %585 = vmatprep.subr.mxu0 0.0
    %586 = vmatpush1.msra.mxu0 0.0
    %587 = vmatprep.subr.mxu0 0.0
    %588 = vmatpush1.msra.mxu0 0.0
    %589 = vmatprep.subr.mxu0 0.0
    %590 = vmatpush1.msra.mxu0 0.0
    %591 = vmatprep.subr.mxu0 0.0
    %592 = vmatpush1.msra.mxu0 0.0
    %593 = vmatprep.subr.mxu0 0.0
    %594 = vmatpush1.msra.mxu0 0.0
    %595 = vmatprep.subr.mxu0 0.0
    %596 = vmatpush1.msra.mxu0 0.0
    %597 = vmatprep.subr.mxu0 0.0
    %598 = vmatpush1.msra.mxu0 0.0
    %599 = vmatprep.subr.mxu0 0.0
    %600 = vmatpush1.msra.mxu0 0.0
    %601 = vmatprep.subr.mxu0 0.0
    %602 = vmatpush1.msra.mxu0 0.0
    %603 = vmatprep.subr.mxu0 0.0
    %604 = vmatpush1.msra.mxu0 0.0
    %605 = vmatprep.subr.mxu0 0.0
    %606 = vmatpush1.msra.mxu0 0.0
    %607 = vmatprep.subr.mxu0 0.0
    %608 = vmatpush1.msra.mxu0 %v572
    %609 = vmatprep.subr.mxu0 0.0
    %610 = vmatpush1.msra.mxu0 %v570
    %611 = vmatprep.subr.mxu0 0.0
    %612 = vmatpush1.msra.mxu0 %v568
    %613 = vmatprep.subr.mxu0 0.0
    %614 = vmatpush1.msra.mxu0 %v566
    %615 = vmatprep.subr.mxu0 0.0
    %616 = vmatpush2.msra.mxu0 0.0
    %617 = vmatprep.subr.mxu0 0.0
    %618 = vmatpush2.msra.mxu0 0.0
    %619 = vmatprep.subr.mxu0 0.0
    %620 = vmatpush2.msra.mxu0 0.0
    %621 = vmatprep.subr.mxu0 0.0
    %622 = vmatpush2.msra.mxu0 0.0
    %623 = vmatprep.subr.mxu0 0.0
    %624 = vmatpush2.msra.mxu0 0.0
    %625 = vmatprep.subr.mxu0 0.0
    %626 = vmatpush2.msra.mxu0 0.0
    %627 = vmatprep.subr.mxu0 0.0
    %628 = vmatpush2.msra.mxu0 0.0
    %629 = vmatprep.subr.mxu0 0.0
    %630 = vmatpush2.msra.mxu0 0.0
    %631 = vmatprep.subr.mxu0 0.0
    %632 = vmatpush2.msra.mxu0 0.0
    %633 = vmatprep.subr.mxu0 0.0
    %634 = vmatpush2.msra.mxu0 0.0
    %635 = vmatprep.subr.mxu0 0.0
    %636 = vmatpush2.msra.mxu0 0.0
    %637 = vmatprep.subr.mxu0 0.0
    %638 = vmatpush2.msra.mxu0 0.0
    %639 = vmatprep.subr.mxu0 0.0
    %640 = vmatpush2.msra.mxu0 0.0
    %641 = vmatprep.subr.mxu0 0.0
    %642 = vmatpush2.msra.mxu0 0.0
    %643 = vmatprep.subr.mxu0 0.0
    %644 = vmatpush2.msra.mxu0 0.0
    %645 = vmatprep.subr.mxu0 0.0
    %646 = vmatpush2.msra.mxu0 0.0
    %647 = vmatprep.mubr.f32.mxu0 0.0
    %648 = vmatmul.mubr.f32.gmra.mxu0 %v578
    %v649 = vpop.f32.mrf.mxu0
    %v650 = vadd.f32 %v560, %v649
    %v651 = vpop.f32.mrf.mxu0
    %652 = vmatprep.mubr.f32.mxu0 0.0
    %653 = vmatmul.mubr.f32.gmra.mxu0 %v581
    %v654 = vpop.f32.mrf.mxu0
    %v655 = vadd.f32 %v560, %v654
    %v656 = vpop.f32.mrf.mxu0
    %657 = vdwg.mxu0
    %v658 = vadd.f32 %v18, %v650
    %v659 = vadd.f32 %v19, %v655
    %v660 = vsel %vm33, %v658, 0.0
    %661 = vadd.xlane.f32.xlu0 %v660
    %v662 = vpop.xlane.xlu0 %661
    %v663 = vsel %vm33, %v659, 0.0
    %664 = vadd.xlane.f32.xlu0 %v663
    %v665 = vpop.xlane.xlu0 %664
    %v666 = vrcp.pop 32.0
    %v667 = vmul.f32 %v662, %v666
    %v668 = vmul.f32 %v665, %v666
    %v669 = vsub.f32 %v658, %v667
    %v670 = vsub.f32 %v659, %v668
    %v671 = vmul.f32 %v669, %v669
    %v672 = vmul.f32 %v670, %v670
    %v673 = vsel %vm33, %v671, 0.0
    %674 = vadd.xlane.f32.xlu0 %v673
    %v675 = vpop.xlane.xlu0 %674
    %v676 = vsel %vm33, %v672, 0.0
    %677 = vadd.xlane.f32.xlu0 %v676
    %v678 = vpop.xlane.xlu0 %677
    %v679 = vmul.f32 %v675, %v666
    %v680 = vmul.f32 %v678, %v666
    %v681 = vadd.f32 %v679, 1e-05
    %v682 = vadd.f32 %v680, 1e-05
    %v683 = vrsqrt.pop %v681
    %v684 = vrsqrt.pop %v682
    %v685 = vmul.f32 %v669, %v683
    %v686 = vmul.f32 %v670, %v684
    %v687 = vlaneseq
    %v688 = vshrl.u32 %v687, 7
    %v689 = vsub.s32 4, %v688
    %v690 = vrot.slane %v28, %v689
    %v691 = vmul.f32 %v685, %v690
    %v692 = vmul.f32 %v686, %v690
    %v693 = vlaneseq
    %v694 = vshrl.u32 %v693, 7
    %v695 = vsub.s32 5, %v694
    %v696 = vrot.slane %v28, %v695
    %v697 = vadd.f32 %v691, %v696
    %v698 = vadd.f32 %v692, %v696
    %v699 = vlaneseq
    %v700 = vshrl.u32 %v699, 7
    %v701 = vsub.s32 2, %v700
    %v702 = vrot.slane %v28, %v701
    %v704 = vsel %vm33, %v697, 0
    %v707 = vsel %vm33, %v698, 0
    %709 = vmatprep.subr.mxu0 0.0
    %710 = vmatpush1.msra.mxu0 0.0
    %711 = vmatprep.subr.mxu0 0.0
    %712 = vmatpush1.msra.mxu0 0.0
    %713 = vmatprep.subr.mxu0 0.0
    %714 = vmatpush1.msra.mxu0 0.0
    %715 = vmatprep.subr.mxu0 0.0
    %716 = vmatpush1.msra.mxu0 0.0
    %717 = vmatprep.subr.mxu0 0.0
    %718 = vmatpush1.msra.mxu0 0.0
    %719 = vmatprep.subr.mxu0 0.0
    %720 = vmatpush1.msra.mxu0 0.0
    %721 = vmatprep.subr.mxu0 0.0
    %722 = vmatpush1.msra.mxu0 0.0
    %723 = vmatprep.subr.mxu0 0.0
    %724 = vmatpush1.msra.mxu0 0.0
    %725 = vmatprep.subr.mxu0 0.0
    %726 = vmatpush1.msra.mxu0 0.0
    %727 = vmatprep.subr.mxu0 0.0
    %728 = vmatpush1.msra.mxu0 0.0
    %729 = vmatprep.subr.mxu0 0.0
    %730 = vmatpush1.msra.mxu0 0.0
    %731 = vmatprep.subr.mxu0 0.0
    %732 = vmatpush1.msra.mxu0 0.0
    %733 = vmatprep.subr.mxu0 0.0
    %734 = vmatpush1.msra.mxu0 %v27
    %735 = vmatprep.subr.mxu0 0.0
    %736 = vmatpush1.msra.mxu0 %v26
    %737 = vmatprep.subr.mxu0 0.0
    %738 = vmatpush1.msra.mxu0 %v25
    %739 = vmatprep.subr.mxu0 0.0
    %740 = vmatpush1.msra.mxu0 %v24
    %741 = vmatprep.subr.mxu0 0.0
    %742 = vmatpush2.msra.mxu0 0.0
    %743 = vmatprep.subr.mxu0 0.0
    %744 = vmatpush2.msra.mxu0 0.0
    %745 = vmatprep.subr.mxu0 0.0
    %746 = vmatpush2.msra.mxu0 0.0
    %747 = vmatprep.subr.mxu0 0.0
    %748 = vmatpush2.msra.mxu0 0.0
    %749 = vmatprep.subr.mxu0 0.0
    %750 = vmatpush2.msra.mxu0 0.0
    %751 = vmatprep.subr.mxu0 0.0
    %752 = vmatpush2.msra.mxu0 0.0
    %753 = vmatprep.subr.mxu0 0.0
    %754 = vmatpush2.msra.mxu0 0.0
    %755 = vmatprep.subr.mxu0 0.0
    %756 = vmatpush2.msra.mxu0 0.0
    %757 = vmatprep.subr.mxu0 0.0
    %758 = vmatpush2.msra.mxu0 0.0
    %759 = vmatprep.subr.mxu0 0.0
    %760 = vmatpush2.msra.mxu0 0.0
    %761 = vmatprep.subr.mxu0 0.0
    %762 = vmatpush2.msra.mxu0 0.0
    %763 = vmatprep.subr.mxu0 0.0
    %764 = vmatpush2.msra.mxu0 0.0
    %765 = vmatprep.subr.mxu0 0.0
    %766 = vmatpush2.msra.mxu0 0.0
    %767 = vmatprep.subr.mxu0 0.0
    %768 = vmatpush2.msra.mxu0 0.0
    %769 = vmatprep.subr.mxu0 0.0
    %770 = vmatpush2.msra.mxu0 0.0
    %771 = vmatprep.subr.mxu0 0.0
    %772 = vmatpush2.msra.mxu0 0.0
    %773 = vmatprep.mubr.f32.mxu0 0.0
    %774 = vmatmul.mubr.f32.gmra.mxu0 %v704
    %v775 = vpop.f32.mrf.mxu0
    %v776 = vadd.f32 %v702, %v775
    %v777 = vpop.f32.mrf.mxu0
    %778 = vmatprep.mubr.f32.mxu0 0.0
    %779 = vmatmul.mubr.f32.gmra.mxu0 %v707
    %v780 = vpop.f32.mrf.mxu0
    %v781 = vadd.f32 %v702, %v780
    %v782 = vpop.f32.mrf.mxu0
    %783 = vdwg.mxu0
    %v784 = vmax.f32 %v776, 0.0
    %v785 = vmax.f32 %v781, 0.0
    %v786 = vld [vmem:[%s2] sm:$0xff]
    %v787 = vld [vmem:[%s2 + $0x8] sm:$0xff]
    %v788 = vld [vmem:[%s2 + $0x10] sm:$0xff]
    %v789 = vld [vmem:[%s2 + $0x18] sm:$0xff]
    %v790 = vld [vmem:[%s2 + $0x20] sm:$0xff]
    %v791 = vld [vmem:[%s2 + $0x28] sm:$0xff]
    %v792 = vld [vmem:[%s2 + $0x30] sm:$0xff]
    %v793 = vld [vmem:[%s2 + $0x38] sm:$0xff]
    %v794 = vlaneseq
    %v795 = vshrl.u32 %v794, 7
    %v796 = vsub.s32 3, %v795
    %v797 = vrot.slane %v28, %v796
    %v799 = vsel %vm352, %v784, 0
    %v802 = vsel %vm352, %v785, 0
    %804 = vmatprep.subr.mxu0 0.0
    %805 = vmatpush1.msra.mxu0 0.0
    %806 = vmatprep.subr.mxu0 0.0
    %807 = vmatpush1.msra.mxu0 0.0
    %808 = vmatprep.subr.mxu0 0.0
    %809 = vmatpush1.msra.mxu0 0.0
    %810 = vmatprep.subr.mxu0 0.0
    %811 = vmatpush1.msra.mxu0 0.0
    %812 = vmatprep.subr.mxu0 0.0
    %813 = vmatpush1.msra.mxu0 0.0
    %814 = vmatprep.subr.mxu0 0.0
    %815 = vmatpush1.msra.mxu0 0.0
    %816 = vmatprep.subr.mxu0 0.0
    %817 = vmatpush1.msra.mxu0 0.0
    %818 = vmatprep.subr.mxu0 0.0
    %819 = vmatpush1.msra.mxu0 0.0
    %820 = vmatprep.subr.mxu0 0.0
    %821 = vmatpush1.msra.mxu0 %v793
    %822 = vmatprep.subr.mxu0 0.0
    %823 = vmatpush1.msra.mxu0 %v792
    %824 = vmatprep.subr.mxu0 0.0
    %825 = vmatpush1.msra.mxu0 %v791
    %826 = vmatprep.subr.mxu0 0.0
    %827 = vmatpush1.msra.mxu0 %v790
    %828 = vmatprep.subr.mxu0 0.0
    %829 = vmatpush1.msra.mxu0 %v789
    %830 = vmatprep.subr.mxu0 0.0
    %831 = vmatpush1.msra.mxu0 %v788
    %832 = vmatprep.subr.mxu0 0.0
    %833 = vmatpush1.msra.mxu0 %v787
    %834 = vmatprep.subr.mxu0 0.0
    %835 = vmatpush1.msra.mxu0 %v786
    %836 = vmatprep.subr.mxu0 0.0
    %837 = vmatpush2.msra.mxu0 0.0
    %838 = vmatprep.subr.mxu0 0.0
    %839 = vmatpush2.msra.mxu0 0.0
    %840 = vmatprep.subr.mxu0 0.0
    %841 = vmatpush2.msra.mxu0 0.0
    %842 = vmatprep.subr.mxu0 0.0
    %843 = vmatpush2.msra.mxu0 0.0
    %844 = vmatprep.subr.mxu0 0.0
    %845 = vmatpush2.msra.mxu0 0.0
    %846 = vmatprep.subr.mxu0 0.0
    %847 = vmatpush2.msra.mxu0 0.0
    %848 = vmatprep.subr.mxu0 0.0
    %849 = vmatpush2.msra.mxu0 0.0
    %850 = vmatprep.subr.mxu0 0.0
    %851 = vmatpush2.msra.mxu0 0.0
    %852 = vmatprep.subr.mxu0 0.0
    %853 = vmatpush2.msra.mxu0 0.0
    %854 = vmatprep.subr.mxu0 0.0
    %855 = vmatpush2.msra.mxu0 0.0
    %856 = vmatprep.subr.mxu0 0.0
    %857 = vmatpush2.msra.mxu0 0.0
    %858 = vmatprep.subr.mxu0 0.0
    %859 = vmatpush2.msra.mxu0 0.0
    %860 = vmatprep.subr.mxu0 0.0
    %861 = vmatpush2.msra.mxu0 0.0
    %862 = vmatprep.subr.mxu0 0.0
    %863 = vmatpush2.msra.mxu0 0.0
    %864 = vmatprep.subr.mxu0 0.0
    %865 = vmatpush2.msra.mxu0 0.0
    %866 = vmatprep.subr.mxu0 0.0
    %867 = vmatpush2.msra.mxu0 0.0
    %868 = vmatprep.mubr.f32.mxu0 0.0
    %869 = vmatmul.mubr.f32.gmra.mxu0 %v799
    %v870 = vpop.f32.mrf.mxu0
    %v871 = vadd.f32 %v797, %v870
    %v872 = vpop.f32.mrf.mxu0
    %873 = vmatprep.mubr.f32.mxu0 0.0
    %874 = vmatmul.mubr.f32.gmra.mxu0 %v802
    %v875 = vpop.f32.mrf.mxu0
    %v876 = vadd.f32 %v797, %v875
    %v877 = vpop.f32.mrf.mxu0
    %878 = vdwg.mxu0
    %v879 = vadd.f32 %v697, %v871
    %v880 = vadd.f32 %v698, %v876
    %v881 = vsel %vm33, %v879, 0.0
    %882 = vadd.xlane.f32.xlu0 %v881
    %v883 = vpop.xlane.xlu0 %882
    %v884 = vsel %vm33, %v880, 0.0
    %885 = vadd.xlane.f32.xlu0 %v884
    %v886 = vpop.xlane.xlu0 %885
    %v887 = vmul.f32 %v883, %v666
    %v888 = vmul.f32 %v886, %v666
    %v889 = vsub.f32 %v879, %v887
    %v890 = vsub.f32 %v880, %v888
    %v891 = vmul.f32 %v889, %v889
    %v892 = vmul.f32 %v890, %v890
    %v893 = vsel %vm33, %v891, 0.0
    %894 = vadd.xlane.f32.xlu0 %v893
    %v895 = vpop.xlane.xlu0 %894
    %v896 = vsel %vm33, %v892, 0.0
    %897 = vadd.xlane.f32.xlu0 %v896
    %v898 = vpop.xlane.xlu0 %897
    %v899 = vmul.f32 %v895, %v666
    %v900 = vmul.f32 %v898, %v666
    %v901 = vadd.f32 %v899, 1e-05
    %v902 = vadd.f32 %v900, 1e-05
    %v903 = vrsqrt.pop %v901
    %v904 = vrsqrt.pop %v902
    %v905 = vmul.f32 %v889, %v903
    %v906 = vmul.f32 %v890, %v904
    %v907 = vlaneseq
    %v908 = vshrl.u32 %v907, 7
    %v909 = vsub.s32 6, %v908
    %v910 = vrot.slane %v28, %v909
    %v911 = vmul.f32 %v905, %v910
    %v912 = vmul.f32 %v906, %v910
    %v913 = vlaneseq
    %v914 = vshrl.u32 %v913, 7
    %v915 = vsub.s32 7, %v914
    %v916 = vrot.slane %v28, %v915
    %v917 = vadd.f32 %v911, %v916
    %v918 = vadd.f32 %v912, %v916
    %919 = vst.msk [vmem:[#allocation2] sm:$0xff] %vm33, %v917
    %920 = vst.msk [vmem:[#allocation2 + $0x8] sm:$0xff] %vm33, %v918
    // Predicated region
    $region18: #{transformer_block.1} parent=1 // pred_check
      _
    $region19: #{transformer_block.1} parent=1 // pred_check_branch
      %922 = sbr.rel (0) target = $region21
    $region20: #{transformer_block.1} parent=1 // pred_region
      %s924 = ssub.s32 256, 256
      %925 = vsyncadd [#allocation3], %s924
      %s926 = sshll.u32 [#allocation2], 4
      %s927 = int_to_ptr.vmem [resolvable:$true] %s926
      %932 = dma.vmem_to_hbm [thread:$0]  %s927, 256, %s4, [#allocation3], 128, 128, 8
    $region21: #{transformer_block.1} parent=1 // pred_fallthru
      _
    // Predicated region
    $region22: #{transformer_block.1} parent=1 // pred_check
      _
    $region23: #{transformer_block.1} parent=1 // pred_check_branch
      %934 = sbr.rel (0) target = $region25
    $region24: #{transformer_block.1} parent=1 // pred_region
      %935 = dma.done [#allocation3], 256
    $region25: #{transformer_block.1} parent=1 // pred_fallthru
      _
    %936 = vsyncpa [#allocation3], 1

</llo_original>
